<compile_context>
chip_gen: v7x
topology: tpu7x:2x2x1
jax: 0.10.0
libtpu: 0.0.40
codegen_flags: <defaults>
</compile_context>

<pallas_src>
import jax
import jax.numpy as jnp
from jax.experimental import pallas as pl
from jax.experimental.pallas import tpu as pltpu


# --------------------------------------------------------------------------- #
# Fused Pallas kernel: model1 -> decode_transfer_img -> model2, one batch elem #
# --------------------------------------------------------------------------- #
def _fused_forward(x_ref, w1_ref, b1_ref, w2_ref, b2_ref,
                   v1_ref, c1_ref, v2_ref, c2_ref):
    """Returns (out_row (1,F), x1_block (C,HW)) for the current batch element."""
    C = x_ref.shape[1]
    HW = x_ref.shape[2]
    xb = x_ref[0]                                              # (C, HW)

    # ---- model1: GAP over spatial axis + Linear -> ReLU -> Linear -> kernel
    gap1 = jnp.mean(x_ref[...], axis=-1)                       # (1, C)
    h1 = jnp.maximum(
        jnp.dot(gap1, w1_ref[...], preferred_element_type=jnp.float32)
        + b1_ref[...], 0.0)                                    # (1, H1)
    kern = (jnp.dot(h1, w2_ref[...], preferred_element_type=jnp.float32)
            + b2_ref[...])                                     # (1, C*C + C)

    # ---- decode_transfer_img: per-image 1x1 conv via unrolled VPU FMAs
    # x1[o, :] = sum_c kern[o*C+c] * x[c, :] + kern[C*C+o]
    rows = []
    means = []
    for o in range(C):
        row = kern[0:1, o * C:o * C + 1] * xb[0:1, :]          # (1, HW)
        for c in range(1, C):
            row = row + kern[0:1, o * C + c:o * C + c + 1] * xb[c:c + 1, :]
        row = row + kern[0:1, C * C + o:C * C + o + 1]
        rows.append(row)
        means.append(jnp.mean(row, axis=-1, keepdims=True))    # (1, 1)
    x1 = jnp.concatenate(rows, axis=0)                         # (C, HW)

    # ---- model2: GAP + Linear -> ReLU -> Linear -> features
    gap2 = jnp.concatenate(means, axis=-1)                     # (1, C)
    h2 = jnp.maximum(
        jnp.dot(gap2, v1_ref[...], preferred_element_type=jnp.float32)
        + c1_ref[...], 0.0)                                    # (1, H2)
    out = (jnp.dot(h2, v2_ref[...], preferred_element_type=jnp.float32)
           + c2_ref[...])                                      # (1, F)
    return out, x1


def _joint_kernel_out_only(x_ref, w1, b1, w2, b2, v1, c1, v2, c2, out_ref):
    out, _ = _fused_forward(x_ref, w1, b1, w2, b2, v1, c1, v2, c2)
    out_ref[0] = out


def _joint_kernel_with_x1(x_ref, w1, b1, w2, b2, v1, c1, v2, c2, out_ref, x1_ref):
    out, x1 = _fused_forward(x_ref, w1, b1, w2, b2, v1, c1, v2, c2)
    out_ref[0] = out
    x1_ref[0] = x1


def joint_forward_pallas(x, params, *, get_all_feat=False):
    """x: (B, C, HW) f32. Fused model1 -> decode -> model2 in one pallas_call."""
    B, C, HW = x.shape
    (w1, b1, w2, b2, v1, c1, v2, c2) = params
    H1 = w1.shape[1]
    K = w2.shape[1]
    H2 = v1.shape[1]
    F = v2.shape[1]

    const = lambda b: (0, 0)       # weights: same block every grid step (stay resident)
    in_specs = [
        pl.BlockSpec((1, C, HW), lambda b: (b, 0, 0)),   # x, per batch element
        pl.BlockSpec((C, H1), const),
        pl.BlockSpec((1, H1), const),
        pl.BlockSpec((H1, K), const),
        pl.BlockSpec((1, K), const),
        pl.BlockSpec((C, H2), const),
        pl.BlockSpec((1, H2), const),
        pl.BlockSpec((H2, F), const),
        pl.BlockSpec((1, F), const),
    ]

    out_shapes = [jax.ShapeDtypeStruct((B, 1, F), jnp.float32)]
    out_specs = [pl.BlockSpec((1, 1, F), lambda b: (b, 0, 0))]
    kernel = _joint_kernel_out_only
    if get_all_feat:
        out_shapes.append(jax.ShapeDtypeStruct((B, C, HW), jnp.float32))
        out_specs.append(pl.BlockSpec((1, C, HW), lambda b: (b, 0, 0)))
        kernel = _joint_kernel_with_x1

    results = pl.pallas_call(
        kernel,
        out_shape=tuple(out_shapes),
        grid=(B,),
        in_specs=in_specs,
        out_specs=tuple(out_specs),
        compiler_params=pltpu.CompilerParams(
            dimension_semantics=("parallel",)),   # v7x: shard batch across both TCs
    )(x, w1, b1, w2, b2, v1, c1, v2, c2)

    out = results[0].reshape(B, F)
    if get_all_feat:
        return out, results[1]
    return out


# --------------------------------------------------------------------------- #
# JointModel wrapper (parameters + forward composition)                       #
# --------------------------------------------------------------------------- #
class JointModelPallas:
    def __init__(self, key, in_channels=4, hidden1=32, hidden2=32, num_features=16):
        C = in_channels
        K = C * C + C                      # model1 predicts 1x1-conv weights + bias
        k = jax.random.split(key, 8)

        def init(kk, shape, fan_in):
            return (jax.random.normal(kk, shape, jnp.float32)
                    * (1.0 / jnp.sqrt(float(fan_in))))

        # model1 parameters
        self.m1_w1 = init(k[0], (C, hidden1), C)
        self.m1_b1 = jnp.zeros((1, hidden1), jnp.float32)
        self.m1_w2 = init(k[1], (hidden1, K), hidden1)
        # bias initialised so the predicted transform starts near identity
        b2 = jnp.concatenate([jnp.eye(C, dtype=jnp.float32).reshape(-1),
                              jnp.zeros((C,), jnp.float32)])
        self.m1_b2 = b2.reshape(1, K)

        # model2 parameters
        self.m2_w1 = init(k[2], (C, hidden2), C)
        self.m2_b1 = jnp.zeros((1, hidden2), jnp.float32)
        self.m2_w2 = init(k[3], (hidden2, num_features), hidden2)
        self.m2_b2 = jnp.zeros((1, num_features), jnp.float32)

        self.C = C

    def _params(self):
        return (self.m1_w1, self.m1_b1, self.m1_w2, self.m1_b2,
                self.m2_w1, self.m2_b1, self.m2_w2, self.m2_b2)

    def __call__(self, x_nchw, get_all_feat=False):
        B, C, H, W = x_nchw.shape
        assert C == self.C
        x = x_nchw.reshape(B, C, H * W).astype(jnp.float32)

        if get_all_feat:
            out, x1 = joint_forward_pallas(x, self._params(), get_all_feat=True)
            return out, x1.reshape(B, C, H, W)
        return joint_forward_pallas(x, self._params(), get_all_feat=False)


# --------------------------------------------------------------------------- #
# Plain-JAX reference (for correctness check)                                 #
# --------------------------------------------------------------------------- #
def _ref_forward(m, x_nchw):
    B, C, H, W = x_nchw.shape
    x = x_nchw.reshape(B, C, H * W).astype(jnp.float32)

    gap = jnp.mean(x, axis=-1)
    h = jnp.maximum(gap @ m.m1_w1 + m.m1_b1, 0.0)
    kernel = h @ m.m1_w2 + m.m1_b2

    kw = kernel[:, :C * C].reshape(B, C, C)
    kb = kernel[:, C * C:].reshape(B, C, 1)
    x1 = jnp.einsum("boc,bch->boh", kw, x) + kb

    gap1 = jnp.mean(x1, axis=-1)
    h2 = jnp.maximum(gap1 @ m.m2_w1 + m.m2_b1, 0.0)
    out = h2 @ m.m2_w2 + m.m2_b2
    return out, x1.reshape(B, C, H, W)


# --------------------------------------------------------------------------- #
if __name__ == "__main__":
    key = jax.random.PRNGKey(0)
    kx, kp = jax.random.split(key)

    # NCHW input, matching PyTorch conventions: batch=2, channels=4, spatial=16x16
    x = jax.random.normal(kx, (2, 4, 16, 16), jnp.float32)

    model = JointModelPallas(kp, in_channels=4, hidden1=32, hidden2=32,
                             num_features=16)

    # Fused forward, both paths
    out, x1 = model(x, get_all_feat=True)
    out = jax.block_until_ready(out)
    x1 = jax.block_until_ready(x1)

    out_only = jax.block_until_ready(model(x, get_all_feat=False))

    ref_out, ref_x1 = _ref_forward(model, x)
    assert out.shape == (2, 16) and x1.shape == (2, 4, 16, 16)
    assert jnp.allclose(out, ref_out, atol=1e-4, rtol=1e-4), "out mismatch vs reference"
    assert jnp.allclose(x1, ref_x1, atol=1e-4, rtol=1e-4), "x1 mismatch vs reference"
    assert jnp.allclose(out_only, ref_out, atol=1e-4, rtol=1e-4), "out-only mismatch"

    print("KERNEL_OK")
</pallas_src>

<mosaic_0001>
module attributes {stable_mosaic.version = 11 : i64} {
  func.func @_joint_kernel_with_x1(%arg0: i32, %arg1: memref<1x4x256xf32, #tpu.memory_space<vmem>>, %arg2: memref<4x32xf32, #tpu.memory_space<vmem>>, %arg3: memref<1x32xf32, #tpu.memory_space<vmem>>, %arg4: memref<32x20xf32, #tpu.memory_space<vmem>>, %arg5: memref<1x20xf32, #tpu.memory_space<vmem>>, %arg6: memref<4x32xf32, #tpu.memory_space<vmem>>, %arg7: memref<1x32xf32, #tpu.memory_space<vmem>>, %arg8: memref<32x16xf32, #tpu.memory_space<vmem>>, %arg9: memref<1x16xf32, #tpu.memory_space<vmem>>, %arg10: memref<1x1x16xf32, #tpu.memory_space<vmem>>, %arg11: memref<1x4x256xf32, #tpu.memory_space<vmem>>) attributes {dimension_semantics = [#tpu.dimension_semantics<parallel>], iteration_bounds = array<i64: 2>, scalar_prefetch = 0 : i64, scratch_operands = 0 : i64, tpu.core_type = #tpu.core_type<tc>, window_params = [{transform_indices = @transform_0, window_bounds = array<i64: 1, 4, 256>}, {pipeline_mode = #tpu.pipeline_mode<synchronous>, transform_indices = @transform_1, window_bounds = array<i64: 4, 32>}, {pipeline_mode = #tpu.pipeline_mode<synchronous>, transform_indices = @transform_2, window_bounds = array<i64: 1, 32>}, {pipeline_mode = #tpu.pipeline_mode<synchronous>, transform_indices = @transform_3, window_bounds = array<i64: 32, 20>}, {pipeline_mode = #tpu.pipeline_mode<synchronous>, transform_indices = @transform_4, window_bounds = array<i64: 1, 20>}, {pipeline_mode = #tpu.pipeline_mode<synchronous>, transform_indices = @transform_5, window_bounds = array<i64: 4, 32>}, {pipeline_mode = #tpu.pipeline_mode<synchronous>, transform_indices = @transform_6, window_bounds = array<i64: 1, 32>}, {pipeline_mode = #tpu.pipeline_mode<synchronous>, transform_indices = @transform_7, window_bounds = array<i64: 32, 16>}, {pipeline_mode = #tpu.pipeline_mode<synchronous>, transform_indices = @transform_8, window_bounds = array<i64: 1, 16>}, {transform_indices = @transform_9, window_bounds = array<i64: 1, 1, 16>}, {transform_indices = @transform_10, window_bounds = array<i64: 1, 4, 256>}]} {
    %c0 = arith.constant 0 : index
    %c0_0 = arith.constant 0 : index
    %c0_1 = arith.constant 0 : index
    %0 = vector.load %arg1[%c0, %c0_0, %c0_1] : memref<1x4x256xf32, #tpu.memory_space<vmem>>, vector<1x4x256xf32>
    %1 = vector.shape_cast %0 : vector<1x4x256xf32> to vector<4x256xf32>
    %c0_2 = arith.constant 0 : index
    %c0_3 = arith.constant 0 : index
    %c0_4 = arith.constant 0 : index
    %2 = vector.load %arg1[%c0_2, %c0_3, %c0_4] : memref<1x4x256xf32, #tpu.memory_space<vmem>>, vector<1x4x256xf32>
    %cst = arith.constant dense<0.000000e+00> : vector<1x4xf32>
    %3 = vector.multi_reduction <add>, %2, %cst [2] : vector<1x4x256xf32> to vector<1x4xf32>
    %cst_5 = arith.constant 2.560000e+02 : f32
    %4 = vector.broadcast %cst_5 : f32 to vector<1x4xf32>
    %5 = arith.divf %3, %4 : vector<1x4xf32>
    %c0_6 = arith.constant 0 : index
    %c0_7 = arith.constant 0 : index
    %6 = vector.load %arg2[%c0_6, %c0_7] : memref<4x32xf32, #tpu.memory_space<vmem>>, vector<4x32xf32>
    %cst_8 = arith.constant dense<0.000000e+00> : vector<1x32xf32>
    %7 = tpu.matmul %5, %6, %cst_8 {dimension_numbers = #tpu.dot_dimension_numbers<[1], [0], [0], [1], [0, 0, 1, 1], [], []>} : vector<1x4xf32>, vector<4x32xf32>, vector<1x32xf32> -> vector<1x32xf32>
    %c0_9 = arith.constant 0 : index
    %c0_10 = arith.constant 0 : index
    %8 = vector.load %arg3[%c0_9, %c0_10] : memref<1x32xf32, #tpu.memory_space<vmem>>, vector<1x32xf32>
    %9 = arith.addf %7, %8 : vector<1x32xf32>
    %cst_11 = arith.constant 0.000000e+00 : f32
    %10 = vector.broadcast %cst_11 : f32 to vector<1x32xf32>
    %11 = arith.maximumf %9, %10 : vector<1x32xf32>
    %c0_12 = arith.constant 0 : index
    %c0_13 = arith.constant 0 : index
    %12 = vector.load %arg4[%c0_12, %c0_13] : memref<32x20xf32, #tpu.memory_space<vmem>>, vector<32x20xf32>
    %cst_14 = arith.constant dense<0.000000e+00> : vector<1x20xf32>
    %13 = tpu.matmul %11, %12, %cst_14 {dimension_numbers = #tpu.dot_dimension_numbers<[1], [0], [0], [1], [0, 0, 1, 1], [], []>} : vector<1x32xf32>, vector<32x20xf32>, vector<1x20xf32> -> vector<1x20xf32>
    %c0_15 = arith.constant 0 : index
    %c0_16 = arith.constant 0 : index
    %14 = vector.load %arg5[%c0_15, %c0_16] : memref<1x20xf32, #tpu.memory_space<vmem>>, vector<1x20xf32>
    %15 = arith.addf %13, %14 : vector<1x20xf32>
    %16 = vector.extract_strided_slice %15 {offsets = [0, 0], sizes = [1, 1], strides = [1, 1]} : vector<1x20xf32> to vector<1x1xf32>
    %17 = vector.extract_strided_slice %1 {offsets = [0, 0], sizes = [1, 256], strides = [1, 1]} : vector<4x256xf32> to vector<1x256xf32>
    %18 = vector.broadcast %16 : vector<1x1xf32> to vector<1x256xf32>
    %19 = arith.mulf %18, %17 : vector<1x256xf32>
    %20 = vector.extract_strided_slice %15 {offsets = [0, 1], sizes = [1, 1], strides = [1, 1]} : vector<1x20xf32> to vector<1x1xf32>
    %21 = vector.extract_strided_slice %1 {offsets = [1, 0], sizes = [1, 256], strides = [1, 1]} : vector<4x256xf32> to vector<1x256xf32>
    %22 = vector.broadcast %20 : vector<1x1xf32> to vector<1x256xf32>
    %23 = arith.mulf %22, %21 : vector<1x256xf32>
    %24 = arith.addf %19, %23 : vector<1x256xf32>
    %25 = vector.extract_strided_slice %15 {offsets = [0, 2], sizes = [1, 1], strides = [1, 1]} : vector<1x20xf32> to vector<1x1xf32>
    %26 = vector.extract_strided_slice %1 {offsets = [2, 0], sizes = [1, 256], strides = [1, 1]} : vector<4x256xf32> to vector<1x256xf32>
    %27 = vector.broadcast %25 : vector<1x1xf32> to vector<1x256xf32>
    %28 = arith.mulf %27, %26 : vector<1x256xf32>
    %29 = arith.addf %24, %28 : vector<1x256xf32>
    %30 = vector.extract_strided_slice %15 {offsets = [0, 3], sizes = [1, 1], strides = [1, 1]} : vector<1x20xf32> to vector<1x1xf32>
    %31 = vector.extract_strided_slice %1 {offsets = [3, 0], sizes = [1, 256], strides = [1, 1]} : vector<4x256xf32> to vector<1x256xf32>
    %32 = vector.broadcast %30 : vector<1x1xf32> to vector<1x256xf32>
    %33 = arith.mulf %32, %31 : vector<1x256xf32>
    %34 = arith.addf %29, %33 : vector<1x256xf32>
    %35 = vector.extract_strided_slice %15 {offsets = [0, 16], sizes = [1, 1], strides = [1, 1]} : vector<1x20xf32> to vector<1x1xf32>
    %36 = vector.broadcast %35 : vector<1x1xf32> to vector<1x256xf32>
    %37 = arith.addf %34, %36 : vector<1x256xf32>
    %cst_17 = arith.constant dense<0.000000e+00> : vector<1xf32>
    %38 = vector.multi_reduction <add>, %37, %cst_17 [1] : vector<1x256xf32> to vector<1xf32>
    %39 = vector.shape_cast %38 : vector<1xf32> to vector<1x1xf32>
    %cst_18 = arith.constant 2.560000e+02 : f32
    %40 = vector.broadcast %cst_18 : f32 to vector<1x1xf32>
    %41 = arith.divf %39, %40 : vector<1x1xf32>
    %42 = vector.extract_strided_slice %15 {offsets = [0, 4], sizes = [1, 1], strides = [1, 1]} : vector<1x20xf32> to vector<1x1xf32>
    %43 = vector.extract_strided_slice %1 {offsets = [0, 0], sizes = [1, 256], strides = [1, 1]} : vector<4x256xf32> to vector<1x256xf32>
    %44 = vector.broadcast %42 : vector<1x1xf32> to vector<1x256xf32>
    %45 = arith.mulf %44, %43 : vector<1x256xf32>
    %46 = vector.extract_strided_slice %15 {offsets = [0, 5], sizes = [1, 1], strides = [1, 1]} : vector<1x20xf32> to vector<1x1xf32>
    %47 = vector.extract_strided_slice %1 {offsets = [1, 0], sizes = [1, 256], strides = [1, 1]} : vector<4x256xf32> to vector<1x256xf32>
    %48 = vector.broadcast %46 : vector<1x1xf32> to vector<1x256xf32>
    %49 = arith.mulf %48, %47 : vector<1x256xf32>
    %50 = arith.addf %45, %49 : vector<1x256xf32>
    %51 = vector.extract_strided_slice %15 {offsets = [0, 6], sizes = [1, 1], strides = [1, 1]} : vector<1x20xf32> to vector<1x1xf32>
    %52 = vector.extract_strided_slice %1 {offsets = [2, 0], sizes = [1, 256], strides = [1, 1]} : vector<4x256xf32> to vector<1x256xf32>
    %53 = vector.broadcast %51 : vector<1x1xf32> to vector<1x256xf32>
    %54 = arith.mulf %53, %52 : vector<1x256xf32>
    %55 = arith.addf %50, %54 : vector<1x256xf32>
    %56 = vector.extract_strided_slice %15 {offsets = [0, 7], sizes = [1, 1], strides = [1, 1]} : vector<1x20xf32> to vector<1x1xf32>
    %57 = vector.extract_strided_slice %1 {offsets = [3, 0], sizes = [1, 256], strides = [1, 1]} : vector<4x256xf32> to vector<1x256xf32>
    %58 = vector.broadcast %56 : vector<1x1xf32> to vector<1x256xf32>
    %59 = arith.mulf %58, %57 : vector<1x256xf32>
    %60 = arith.addf %55, %59 : vector<1x256xf32>
    %61 = vector.extract_strided_slice %15 {offsets = [0, 17], sizes = [1, 1], strides = [1, 1]} : vector<1x20xf32> to vector<1x1xf32>
    %62 = vector.broadcast %61 : vector<1x1xf32> to vector<1x256xf32>
    %63 = arith.addf %60, %62 : vector<1x256xf32>
    %cst_19 = arith.constant dense<0.000000e+00> : vector<1xf32>
    %64 = vector.multi_reduction <add>, %63, %cst_19 [1] : vector<1x256xf32> to vector<1xf32>
    %65 = vector.shape_cast %64 : vector<1xf32> to vector<1x1xf32>
    %cst_20 = arith.constant 2.560000e+02 : f32
    %66 = vector.broadcast %cst_20 : f32 to vector<1x1xf32>
    %67 = arith.divf %65, %66 : vector<1x1xf32>
    %68 = vector.extract_strided_slice %15 {offsets = [0, 8], sizes = [1, 1], strides = [1, 1]} : vector<1x20xf32> to vector<1x1xf32>
    %69 = vector.extract_strided_slice %1 {offsets = [0, 0], sizes = [1, 256], strides = [1, 1]} : vector<4x256xf32> to vector<1x256xf32>
    %70 = vector.broadcast %68 : vector<1x1xf32> to vector<1x256xf32>
    %71 = arith.mulf %70, %69 : vector<1x256xf32>
    %72 = vector.extract_strided_slice %15 {offsets = [0, 9], sizes = [1, 1], strides = [1, 1]} : vector<1x20xf32> to vector<1x1xf32>
    %73 = vector.extract_strided_slice %1 {offsets = [1, 0], sizes = [1, 256], strides = [1, 1]} : vector<4x256xf32> to vector<1x256xf32>
    %74 = vector.broadcast %72 : vector<1x1xf32> to vector<1x256xf32>
    %75 = arith.mulf %74, %73 : vector<1x256xf32>
    %76 = arith.addf %71, %75 : vector<1x256xf32>
    %77 = vector.extract_strided_slice %15 {offsets = [0, 10], sizes = [1, 1], strides = [1, 1]} : vector<1x20xf32> to vector<1x1xf32>
    %78 = vector.extract_strided_slice %1 {offsets = [2, 0], sizes = [1, 256], strides = [1, 1]} : vector<4x256xf32> to vector<1x256xf32>
    %79 = vector.broadcast %77 : vector<1x1xf32> to vector<1x256xf32>
    %80 = arith.mulf %79, %78 : vector<1x256xf32>
    %81 = arith.addf %76, %80 : vector<1x256xf32>
    %82 = vector.extract_strided_slice %15 {offsets = [0, 11], sizes = [1, 1], strides = [1, 1]} : vector<1x20xf32> to vector<1x1xf32>
    %83 = vector.extract_strided_slice %1 {offsets = [3, 0], sizes = [1, 256], strides = [1, 1]} : vector<4x256xf32> to vector<1x256xf32>
    %84 = vector.broadcast %82 : vector<1x1xf32> to vector<1x256xf32>
    %85 = arith.mulf %84, %83 : vector<1x256xf32>
    %86 = arith.addf %81, %85 : vector<1x256xf32>
    %87 = vector.extract_strided_slice %15 {offsets = [0, 18], sizes = [1, 1], strides = [1, 1]} : vector<1x20xf32> to vector<1x1xf32>
    %88 = vector.broadcast %87 : vector<1x1xf32> to vector<1x256xf32>
    %89 = arith.addf %86, %88 : vector<1x256xf32>
    %cst_21 = arith.constant dense<0.000000e+00> : vector<1xf32>
    %90 = vector.multi_reduction <add>, %89, %cst_21 [1] : vector<1x256xf32> to vector<1xf32>
    %91 = vector.shape_cast %90 : vector<1xf32> to vector<1x1xf32>
    %cst_22 = arith.constant 2.560000e+02 : f32
    %92 = vector.broadcast %cst_22 : f32 to vector<1x1xf32>
    %93 = arith.divf %91, %92 : vector<1x1xf32>
    %94 = vector.extract_strided_slice %15 {offsets = [0, 12], sizes = [1, 1], strides = [1, 1]} : vector<1x20xf32> to vector<1x1xf32>
    %95 = vector.extract_strided_slice %1 {offsets = [0, 0], sizes = [1, 256], strides = [1, 1]} : vector<4x256xf32> to vector<1x256xf32>
    %96 = vector.broadcast %94 : vector<1x1xf32> to vector<1x256xf32>
    %97 = arith.mulf %96, %95 : vector<1x256xf32>
    %98 = vector.extract_strided_slice %15 {offsets = [0, 13], sizes = [1, 1], strides = [1, 1]} : vector<1x20xf32> to vector<1x1xf32>
    %99 = vector.extract_strided_slice %1 {offsets = [1, 0], sizes = [1, 256], strides = [1, 1]} : vector<4x256xf32> to vector<1x256xf32>
    %100 = vector.broadcast %98 : vector<1x1xf32> to vector<1x256xf32>
    %101 = arith.mulf %100, %99 : vector<1x256xf32>
    %102 = arith.addf %97, %101 : vector<1x256xf32>
    %103 = vector.extract_strided_slice %15 {offsets = [0, 14], sizes = [1, 1], strides = [1, 1]} : vector<1x20xf32> to vector<1x1xf32>
    %104 = vector.extract_strided_slice %1 {offsets = [2, 0], sizes = [1, 256], strides = [1, 1]} : vector<4x256xf32> to vector<1x256xf32>
    %105 = vector.broadcast %103 : vector<1x1xf32> to vector<1x256xf32>
    %106 = arith.mulf %105, %104 : vector<1x256xf32>
    %107 = arith.addf %102, %106 : vector<1x256xf32>
    %108 = vector.extract_strided_slice %15 {offsets = [0, 15], sizes = [1, 1], strides = [1, 1]} : vector<1x20xf32> to vector<1x1xf32>
    %109 = vector.extract_strided_slice %1 {offsets = [3, 0], sizes = [1, 256], strides = [1, 1]} : vector<4x256xf32> to vector<1x256xf32>
    %110 = vector.broadcast %108 : vector<1x1xf32> to vector<1x256xf32>
    %111 = arith.mulf %110, %109 : vector<1x256xf32>
    %112 = arith.addf %107, %111 : vector<1x256xf32>
    %113 = vector.extract_strided_slice %15 {offsets = [0, 19], sizes = [1, 1], strides = [1, 1]} : vector<1x20xf32> to vector<1x1xf32>
    %114 = vector.broadcast %113 : vector<1x1xf32> to vector<1x256xf32>
    %115 = arith.addf %112, %114 : vector<1x256xf32>
    %cst_23 = arith.constant dense<0.000000e+00> : vector<1xf32>
    %116 = vector.multi_reduction <add>, %115, %cst_23 [1] : vector<1x256xf32> to vector<1xf32>
    %117 = vector.shape_cast %116 : vector<1xf32> to vector<1x1xf32>
    %cst_24 = arith.constant 2.560000e+02 : f32
    %118 = vector.broadcast %cst_24 : f32 to vector<1x1xf32>
    %119 = arith.divf %117, %118 : vector<1x1xf32>
    %120 = tpu.concatenate %37, %63, %89, %115 in 0 : vector<1x256xf32>, vector<1x256xf32>, vector<1x256xf32>, vector<1x256xf32> -> vector<4x256xf32>
    %121 = tpu.concatenate %41, %67, %93, %119 in 1 : vector<1x1xf32>, vector<1x1xf32>, vector<1x1xf32>, vector<1x1xf32> -> vector<1x4xf32>
    %c0_25 = arith.constant 0 : index
    %c0_26 = arith.constant 0 : index
    %122 = vector.load %arg6[%c0_25, %c0_26] : memref<4x32xf32, #tpu.memory_space<vmem>>, vector<4x32xf32>
    %cst_27 = arith.constant dense<0.000000e+00> : vector<1x32xf32>
    %123 = tpu.matmul %121, %122, %cst_27 {dimension_numbers = #tpu.dot_dimension_numbers<[1], [0], [0], [1], [0, 0, 1, 1], [], []>} : vector<1x4xf32>, vector<4x32xf32>, vector<1x32xf32> -> vector<1x32xf32>
    %c0_28 = arith.constant 0 : index
    %c0_29 = arith.constant 0 : index
    %124 = vector.load %arg7[%c0_28, %c0_29] : memref<1x32xf32, #tpu.memory_space<vmem>>, vector<1x32xf32>
    %125 = arith.addf %123, %124 : vector<1x32xf32>
    %cst_30 = arith.constant 0.000000e+00 : f32
    %126 = vector.broadcast %cst_30 : f32 to vector<1x32xf32>
    %127 = arith.maximumf %125, %126 : vector<1x32xf32>
    %c0_31 = arith.constant 0 : index
    %c0_32 = arith.constant 0 : index
    %128 = vector.load %arg8[%c0_31, %c0_32] : memref<32x16xf32, #tpu.memory_space<vmem>>, vector<32x16xf32>
    %cst_33 = arith.constant dense<0.000000e+00> : vector<1x16xf32>
    %129 = tpu.matmul %127, %128, %cst_33 {dimension_numbers = #tpu.dot_dimension_numbers<[1], [0], [0], [1], [0, 0, 1, 1], [], []>} : vector<1x32xf32>, vector<32x16xf32>, vector<1x16xf32> -> vector<1x16xf32>
    %c0_34 = arith.constant 0 : index
    %c0_35 = arith.constant 0 : index
    %130 = vector.load %arg9[%c0_34, %c0_35] : memref<1x16xf32, #tpu.memory_space<vmem>>, vector<1x16xf32>
    %131 = arith.addf %129, %130 : vector<1x16xf32>
    %c0_36 = arith.constant 0 : index
    %c0_37 = arith.constant 0 : index
    %c0_38 = arith.constant 0 : index
    %132 = vector.load %arg10[%c0_36, %c0_37, %c0_38] : memref<1x1x16xf32, #tpu.memory_space<vmem>>, vector<1x1x16xf32>
    %133 = vector.shape_cast %132 : vector<1x1x16xf32> to vector<1x16xf32>
    %134 = vector.shape_cast %131 : vector<1x16xf32> to vector<1x1x16xf32>
    tpu.vector_store %arg10[%c0_36, %c0_37, %c0_38], %134 {strides = array<i32>} : memref<1x1x16xf32, #tpu.memory_space<vmem>>, vector<1x1x16xf32>,
    %c0_39 = arith.constant 0 : index
    %c0_40 = arith.constant 0 : index
    %c0_41 = arith.constant 0 : index
    %135 = vector.load %arg11[%c0_39, %c0_40, %c0_41] : memref<1x4x256xf32, #tpu.memory_space<vmem>>, vector<1x4x256xf32>
    %136 = vector.shape_cast %135 : vector<1x4x256xf32> to vector<4x256xf32>
    %137 = vector.shape_cast %120 : vector<4x256xf32> to vector<1x4x256xf32>
    tpu.vector_store %arg11[%c0_39, %c0_40, %c0_41], %137 {strides = array<i32>} : memref<1x4x256xf32, #tpu.memory_space<vmem>>, vector<1x4x256xf32>,
    return
  }
  func.func @transform_0(%arg0: i32) -> (i32, i32, i32) {
    %c0_i32 = arith.constant 0 : i32
    %c0_i32_0 = arith.constant 0 : i32
    %c0_i32_1 = arith.constant 0 : i32
    return %arg0, %c0_i32, %c0_i32_0 : i32, i32, i32
  }
  func.func @transform_1(%arg0: i32) -> (i32, i32) {
    %c0_i32 = arith.constant 0 : i32
    %c0_i32_0 = arith.constant 0 : i32
    %c0_i32_1 = arith.constant 0 : i32
    return %c0_i32, %c0_i32_0 : i32, i32
  }
  func.func @transform_2(%arg0: i32) -> (i32, i32) {
    %c0_i32 = arith.constant 0 : i32
    %c0_i32_0 = arith.constant 0 : i32
    %c0_i32_1 = arith.constant 0 : i32
    return %c0_i32, %c0_i32_0 : i32, i32
  }
  func.func @transform_3(%arg0: i32) -> (i32, i32) {
    %c0_i32 = arith.constant 0 : i32
    %c0_i32_0 = arith.constant 0 : i32
    %c0_i32_1 = arith.constant 0 : i32
    return %c0_i32, %c0_i32_0 : i32, i32
  }
  func.func @transform_4(%arg0: i32) -> (i32, i32) {
    %c0_i32 = arith.constant 0 : i32
    %c0_i32_0 = arith.constant 0 : i32
    %c0_i32_1 = arith.constant 0 : i32
    return %c0_i32, %c0_i32_0 : i32, i32
  }
  func.func @transform_5(%arg0: i32) -> (i32, i32) {
    %c0_i32 = arith.constant 0 : i32
    %c0_i32_0 = arith.constant 0 : i32
    %c0_i32_1 = arith.constant 0 : i32
    return %c0_i32, %c0_i32_0 : i32, i32
  }
  func.func @transform_6(%arg0: i32) -> (i32, i32) {
    %c0_i32 = arith.constant 0 : i32
    %c0_i32_0 = arith.constant 0 : i32
    %c0_i32_1 = arith.constant 0 : i32
    return %c0_i32, %c0_i32_0 : i32, i32
  }
  func.func @transform_7(%arg0: i32) -> (i32, i32) {
    %c0_i32 = arith.constant 0 : i32
    %c0_i32_0 = arith.constant 0 : i32
    %c0_i32_1 = arith.constant 0 : i32
    return %c0_i32, %c0_i32_0 : i32, i32
  }
  func.func @transform_8(%arg0: i32) -> (i32, i32) {
    %c0_i32 = arith.constant 0 : i32
    %c0_i32_0 = arith.constant 0 : i32
    %c0_i32_1 = arith.constant 0 : i32
    return %c0_i32, %c0_i32_0 : i32, i32
  }
  func.func @transform_9(%arg0: i32) -> (i32, i32, i32) {
    %c0_i32 = arith.constant 0 : i32
    %c0_i32_0 = arith.constant 0 : i32
    %c0_i32_1 = arith.constant 0 : i32
    return %arg0, %c0_i32, %c0_i32_0 : i32, i32, i32
  }
  func.func @transform_10(%arg0: i32) -> (i32, i32, i32) {
    %c0_i32 = arith.constant 0 : i32
    %c0_i32_0 = arith.constant 0 : i32
    %c0_i32_1 = arith.constant 0 : i32
    return %arg0, %c0_i32, %c0_i32_0 : i32, i32, i32
  }
}

</mosaic_0001>

<llo_original>
// kernel: tpu_custom_call.1
$region0: #{tpu_custom_call.1}
  #allocation0 [shape = 'u32[]', space=smem, size = 0x4, offset = 0x4, fixed_abs, tag = 'smem constant byte address 0x4 - core index']
  #allocation1 [shape = 'u32[144,128]{1,0:T(1,128)}', space=vmem, size = 0x12000, scoped, tag = 'internal scratch']
  %s0 = inlined_call_operand.vmem [shape: f32[2,4,256], index: 0, kind: input, shape index: {}]
  %s1 = inlined_call_operand.vmem [shape: f32[4,32], index: 1, kind: input, shape index: {}]
  %s2 = inlined_call_operand.vmem [shape: f32[1,32], index: 2, kind: input, shape index: {}]
  %s3 = inlined_call_operand.vmem [shape: f32[32,20], index: 3, kind: input, shape index: {}]
  %s4 = inlined_call_operand.vmem [shape: f32[1,20], index: 4, kind: input, shape index: {}]
  %s5 = inlined_call_operand.vmem [shape: f32[4,32], index: 5, kind: input, shape index: {}]
  %s6 = inlined_call_operand.vmem [shape: f32[1,32], index: 6, kind: input, shape index: {}]
  %s7 = inlined_call_operand.vmem [shape: f32[32,16], index: 7, kind: input, shape index: {}]
  %s8 = inlined_call_operand.vmem [shape: f32[1,16], index: 8, kind: input, shape index: {}]
  %s9 = inlined_call_operand.hbm [shape: f32[2,1,16], index: 9, kind: output, shape index: {0}]
  %s10 = inlined_call_operand.hbm [shape: f32[2,4,256], index: 10, kind: output, shape index: {1}]
  %11 = xla_tuple %s9, %s10
  %s12 = sld [smem:[#allocation0]]
  $region77: #{tpu_custom_call.1} parent=0
    _
  %s14 = ssub.s32 1, %s12
  %s15 = scalar_select 0, %s14, %s12
  $region1: #{tpu_custom_call.1} parent=0
    #allocation2 [shape = 'u8[1024]{0}', space=vmem, size = 0x400, scoped, tag = 'output window, operand 0']
    #allocation3 [shape = 's32[2]{0}', space=sflag, size = 0x8, scoped, tag = 'scoped memory for tpu_custom_call.1']
    #allocation4 [shape = 'u8[8192]{0}', space=vmem, size = 0x2000, scoped, tag = 'output window, operand 1']
    #allocation5 [shape = 's32[2]{0}', space=sflag, size = 0x8, scoped, tag = 'scoped memory for tpu_custom_call.1']
    %16 = vsyncpa [#allocation3], 0
    %s17 = scalar_lea.sflag [#allocation3], 1
    %18 = vsyncpa %s17, 0
    %19 = vsyncpa [#allocation5], 0
    %s20 = scalar_lea.sflag [#allocation5], 1
    %21 = vsyncpa %s20, 0
    loop: start=0, step=1, limit=4
    $region2: #{tpu_custom_call.1} parent=1 // loop_pre_header
      _
    $region3: #{tpu_custom_call.1} parent=1 // loop_header
      %s23 = sphi 0, %s27
      %p24 = scmp.ge.s32.totalorder %s23, 4
      %s33 = sphi 0, %s35
      %s36 = sphi 0, %s33
      %s37 = sphi 0, %s36
      %s53 = sphi 0, %s37
      %s57 = sphi 0, %s57
      %s59 = sphi 0, %s57
      %s60 = sphi 0, %s59
      %s74 = sphi 0, %s60
      %s78 = sphi 0, %s78
      %s80 = sphi 0, %s78
      %s81 = sphi 0, %s80
      %s95 = sphi 0, %s81
      %s99 = sphi 0, %s99
      %s101 = sphi 0, %s99
      %s102 = sphi 0, %s101
      %s116 = sphi 0, %s102
      %s120 = sphi 0, %s120
      %s122 = sphi 0, %s120
      %s123 = sphi 0, %s122
      %s137 = sphi 0, %s123
      %s141 = sphi 0, %s141
      %s143 = sphi 0, %s141
      %s144 = sphi 0, %s143
      %s158 = sphi 0, %s144
      %s162 = sphi 0, %s162
      %s164 = sphi 0, %s162
      %s165 = sphi 0, %s164
      %s179 = sphi 0, %s165
      %s183 = sphi 0, %s183
      %s185 = sphi 0, %s183
      %s186 = sphi 0, %s185
      %s200 = sphi 0, %s186
      %s204 = sphi 0, %s204
      %s206 = sphi 0, %s204
      %s207 = sphi 0, %s206
      %s221 = sphi 0, %s207
      %s227 = sphi 0, %s229
      %s230 = sphi 0, %s227
      %s231 = sphi 0, %s230
      %s247 = sphi 0, %s231
      %s253 = sphi 0, %s255
      %s256 = sphi 0, %s253
      %s257 = sphi 0, %s256
      %s273 = sphi 0, %s257
    $region4: #{tpu_custom_call.1} parent=1 // loop_header_branch
      %26 = sbr.rel (%p24) target = $region8
    $region5: #{tpu_custom_call.1} parent=1 // loop_body
      %s28 = ssub.s32 %s23, 1
      %s29 = ssub.s32 %s23, 2
      %s30 = sadd.s32 %s23, 1
      %s31 = ssub.s32 %s23, %s30
      %p32 = scmp.eq.s32.totalorder %s31, 0
      %s34 = sadd.s32 %s33, 1
      %s35 = scalar_select %p32, %s33, %s34
      %p38 = pneg %p32
      %p39 = scmp.eq.s32.totalorder %s23, 1
      %p40 = por %p38, %p39
      %p41 = scmp.ne.s32.totalorder %s33, %s36
      %p42 = scmp.eq.s32.totalorder %s23, 0
      %p43 = por %p41, %p42
      %p44 = scmp.ne.s32.totalorder %s33, %s36
      %p45 = scmp.eq.s32.totalorder %s28, 1
      %p46 = por %p44, %p45
      %p47 = scmp.ne.s32.totalorder %s36, %s37
      %p48 = scmp.eq.s32.totalorder %s28, 0
      %p49 = por %p47, %p48
      %p50 = scmp.ne.s32.totalorder %s36, %s37
      %p51 = scmp.eq.s32.totalorder %s29, 1
      %p52 = por %p50, %p51
      %p54 = scmp.ne.s32.totalorder %s37, %s53
      %p55 = scmp.eq.s32.totalorder %s29, 0
      %p56 = por %p54, %p55
      %s58 = sadd.s32 %s57, 1
      %p61 = scmp.eq.s32.totalorder %s23, 1
      %p62 = scmp.ne.s32.totalorder %s57, %s59
      %p63 = scmp.eq.s32.totalorder %s23, 0
      %p64 = por %p62, %p63
      %p65 = scmp.ne.s32.totalorder %s57, %s59
      %p66 = scmp.eq.s32.totalorder %s28, 1
      %p67 = por %p65, %p66
      %p68 = scmp.ne.s32.totalorder %s59, %s60
      %p69 = scmp.eq.s32.totalorder %s28, 0
      %p70 = por %p68, %p69
      %p71 = scmp.ne.s32.totalorder %s59, %s60
      %p72 = scmp.eq.s32.totalorder %s29, 1
      %p73 = por %p71, %p72
      %p75 = scmp.ne.s32.totalorder %s60, %s74
      %p76 = scmp.eq.s32.totalorder %s29, 0
      %p77 = por %p75, %p76
      %s79 = sadd.s32 %s78, 1
      %p82 = scmp.eq.s32.totalorder %s23, 1
      %p83 = scmp.ne.s32.totalorder %s78, %s80
      %p84 = scmp.eq.s32.totalorder %s23, 0
      %p85 = por %p83, %p84
      %p86 = scmp.ne.s32.totalorder %s78, %s80
      %p87 = scmp.eq.s32.totalorder %s28, 1
      %p88 = por %p86, %p87
      %p89 = scmp.ne.s32.totalorder %s80, %s81
      %p90 = scmp.eq.s32.totalorder %s28, 0
      %p91 = por %p89, %p90
      %p92 = scmp.ne.s32.totalorder %s80, %s81
      %p93 = scmp.eq.s32.totalorder %s29, 1
      %p94 = por %p92, %p93
      %p96 = scmp.ne.s32.totalorder %s81, %s95
      %p97 = scmp.eq.s32.totalorder %s29, 0
      %p98 = por %p96, %p97
      %s100 = sadd.s32 %s99, 1
      %p103 = scmp.eq.s32.totalorder %s23, 1
      %p104 = scmp.ne.s32.totalorder %s99, %s101
      %p105 = scmp.eq.s32.totalorder %s23, 0
      %p106 = por %p104, %p105
      %p107 = scmp.ne.s32.totalorder %s99, %s101
      %p108 = scmp.eq.s32.totalorder %s28, 1
      %p109 = por %p107, %p108
      %p110 = scmp.ne.s32.totalorder %s101, %s102
      %p111 = scmp.eq.s32.totalorder %s28, 0
      %p112 = por %p110, %p111
      %p113 = scmp.ne.s32.totalorder %s101, %s102
      %p114 = scmp.eq.s32.totalorder %s29, 1
      %p115 = por %p113, %p114
      %p117 = scmp.ne.s32.totalorder %s102, %s116
      %p118 = scmp.eq.s32.totalorder %s29, 0
      %p119 = por %p117, %p118
      %s121 = sadd.s32 %s120, 1
      %p124 = scmp.eq.s32.totalorder %s23, 1
      %p125 = scmp.ne.s32.totalorder %s120, %s122
      %p126 = scmp.eq.s32.totalorder %s23, 0
      %p127 = por %p125, %p126
      %p128 = scmp.ne.s32.totalorder %s120, %s122
      %p129 = scmp.eq.s32.totalorder %s28, 1
      %p130 = por %p128, %p129
      %p131 = scmp.ne.s32.totalorder %s122, %s123
      %p132 = scmp.eq.s32.totalorder %s28, 0
      %p133 = por %p131, %p132
      %p134 = scmp.ne.s32.totalorder %s122, %s123
      %p135 = scmp.eq.s32.totalorder %s29, 1
      %p136 = por %p134, %p135
      %p138 = scmp.ne.s32.totalorder %s123, %s137
      %p139 = scmp.eq.s32.totalorder %s29, 0
      %p140 = por %p138, %p139
      %s142 = sadd.s32 %s141, 1
      %p145 = scmp.eq.s32.totalorder %s23, 1
      %p146 = scmp.ne.s32.totalorder %s141, %s143
      %p147 = scmp.eq.s32.totalorder %s23, 0
      %p148 = por %p146, %p147
      %p149 = scmp.ne.s32.totalorder %s141, %s143
      %p150 = scmp.eq.s32.totalorder %s28, 1
      %p151 = por %p149, %p150
      %p152 = scmp.ne.s32.totalorder %s143, %s144
      %p153 = scmp.eq.s32.totalorder %s28, 0
      %p154 = por %p152, %p153
      %p155 = scmp.ne.s32.totalorder %s143, %s144
      %p156 = scmp.eq.s32.totalorder %s29, 1
      %p157 = por %p155, %p156
      %p159 = scmp.ne.s32.totalorder %s144, %s158
      %p160 = scmp.eq.s32.totalorder %s29, 0
      %p161 = por %p159, %p160
      %s163 = sadd.s32 %s162, 1
      %p166 = scmp.eq.s32.totalorder %s23, 1
      %p167 = scmp.ne.s32.totalorder %s162, %s164
      %p168 = scmp.eq.s32.totalorder %s23, 0
      %p169 = por %p167, %p168
      %p170 = scmp.ne.s32.totalorder %s162, %s164
      %p171 = scmp.eq.s32.totalorder %s28, 1
      %p172 = por %p170, %p171
      %p173 = scmp.ne.s32.totalorder %s164, %s165
      %p174 = scmp.eq.s32.totalorder %s28, 0
      %p175 = por %p173, %p174
      %p176 = scmp.ne.s32.totalorder %s164, %s165
      %p177 = scmp.eq.s32.totalorder %s29, 1
      %p178 = por %p176, %p177
      %p180 = scmp.ne.s32.totalorder %s165, %s179
      %p181 = scmp.eq.s32.totalorder %s29, 0
      %p182 = por %p180, %p181
      %s184 = sadd.s32 %s183, 1
      %p187 = scmp.eq.s32.totalorder %s23, 1
      %p188 = scmp.ne.s32.totalorder %s183, %s185
      %p189 = scmp.eq.s32.totalorder %s23, 0
      %p190 = por %p188, %p189
      %p191 = scmp.ne.s32.totalorder %s183, %s185
      %p192 = scmp.eq.s32.totalorder %s28, 1
      %p193 = por %p191, %p192
      %p194 = scmp.ne.s32.totalorder %s185, %s186
      %p195 = scmp.eq.s32.totalorder %s28, 0
      %p196 = por %p194, %p195
      %p197 = scmp.ne.s32.totalorder %s185, %s186
      %p198 = scmp.eq.s32.totalorder %s29, 1
      %p199 = por %p197, %p198
      %p201 = scmp.ne.s32.totalorder %s186, %s200
      %p202 = scmp.eq.s32.totalorder %s29, 0
      %p203 = por %p201, %p202
      %s205 = sadd.s32 %s204, 1
      %p208 = scmp.eq.s32.totalorder %s23, 1
      %p209 = scmp.ne.s32.totalorder %s204, %s206
      %p210 = scmp.eq.s32.totalorder %s23, 0
      %p211 = por %p209, %p210
      %p212 = scmp.ne.s32.totalorder %s204, %s206
      %p213 = scmp.eq.s32.totalorder %s28, 1
      %p214 = por %p212, %p213
      %p215 = scmp.ne.s32.totalorder %s206, %s207
      %p216 = scmp.eq.s32.totalorder %s28, 0
      %p217 = por %p215, %p216
      %p218 = scmp.ne.s32.totalorder %s206, %s207
      %p219 = scmp.eq.s32.totalorder %s29, 1
      %p220 = por %p218, %p219
      %p222 = scmp.ne.s32.totalorder %s207, %s221
      %p223 = scmp.eq.s32.totalorder %s29, 0
      %p224 = por %p222, %p223
      %s225 = ssub.s32 %s23, %s30
      %p226 = scmp.eq.s32.totalorder %s225, 0
      %s228 = sadd.s32 %s227, 1
      %s229 = scalar_select %p226, %s227, %s228
      %p232 = pneg %p226
      %p233 = scmp.eq.s32.totalorder %s23, 1
      %p234 = por %p232, %p233
      %p235 = scmp.ne.s32.totalorder %s227, %s230
      %p236 = scmp.eq.s32.totalorder %s23, 0
      %p237 = por %p235, %p236
      %p238 = scmp.ne.s32.totalorder %s227, %s230
      %p239 = scmp.eq.s32.totalorder %s28, 1
      %p240 = por %p238, %p239
      %p241 = scmp.ne.s32.totalorder %s230, %s231
      %p242 = scmp.eq.s32.totalorder %s28, 0
      %p243 = por %p241, %p242
      %p244 = scmp.ne.s32.totalorder %s230, %s231
      %p245 = scmp.eq.s32.totalorder %s29, 1
      %p246 = por %p244, %p245
      %p248 = scmp.ne.s32.totalorder %s231, %s247
      %p249 = scmp.eq.s32.totalorder %s29, 0
      %p250 = por %p248, %p249
      %s251 = ssub.s32 %s23, %s30
      %p252 = scmp.eq.s32.totalorder %s251, 0
      %s254 = sadd.s32 %s253, 1
      %s255 = scalar_select %p252, %s253, %s254
      %p258 = pneg %p252
      %p259 = scmp.eq.s32.totalorder %s23, 1
      %p260 = por %p258, %p259
      %p261 = scmp.ne.s32.totalorder %s253, %s256
      %p262 = scmp.eq.s32.totalorder %s23, 0
      %p263 = por %p261, %p262
      %p264 = scmp.ne.s32.totalorder %s253, %s256
      %p265 = scmp.eq.s32.totalorder %s28, 1
      %p266 = por %p264, %p265
      %p267 = scmp.ne.s32.totalorder %s256, %s257
      %p268 = scmp.eq.s32.totalorder %s28, 0
      %p269 = por %p267, %p268
      %p270 = scmp.ne.s32.totalorder %s256, %s257
      %p271 = scmp.eq.s32.totalorder %s29, 1
      %p272 = por %p270, %p271
      %p274 = scmp.ne.s32.totalorder %s257, %s273
      %p275 = scmp.eq.s32.totalorder %s29, 0
      %p276 = por %p274, %p275
      %p277 = scmp.le.s32.totalorder 1, %s23
      %p278 = scmp.lt.s32.totalorder %s23, 3
      %p279 = pnand %p277, %p278
      %p280 = pneg %p279
      // Predicated region
      $region9: #{tpu_custom_call.1} parent=5 // pred_check
        _
      $region10: #{tpu_custom_call.1} parent=5 // pred_check_branch
        %282 = sbr.rel (%p279) target = $region12
      $region11: #{tpu_custom_call.1} parent=5 // pred_region
        %s283 = ssub.s32 %s23, 1
        // Predicated region
        $region13: #{tpu_custom_call.1} parent=11 // pred_check
          %p284 = pneg %p70
        $region14: #{tpu_custom_call.1} parent=11 // pred_check_branch
          %286 = sbr.rel (%p284) target = $region16
        $region15: #{tpu_custom_call.1} parent=11 // pred_region
          _
        $region16: #{tpu_custom_call.1} parent=11 // pred_fallthru
          _
        // Predicated region
        $region17: #{tpu_custom_call.1} parent=11 // pred_check
          %p287 = pneg %p91
        $region18: #{tpu_custom_call.1} parent=11 // pred_check_branch
          %289 = sbr.rel (%p287) target = $region20
        $region19: #{tpu_custom_call.1} parent=11 // pred_region
          _
        $region20: #{tpu_custom_call.1} parent=11 // pred_fallthru
          _
        // Predicated region
        $region21: #{tpu_custom_call.1} parent=11 // pred_check
          %p290 = pneg %p112
        $region22: #{tpu_custom_call.1} parent=11 // pred_check_branch
          %292 = sbr.rel (%p290) target = $region24
        $region23: #{tpu_custom_call.1} parent=11 // pred_region
          _
        $region24: #{tpu_custom_call.1} parent=11 // pred_fallthru
          _
        // Predicated region
        $region25: #{tpu_custom_call.1} parent=11 // pred_check
          %p293 = pneg %p133
        $region26: #{tpu_custom_call.1} parent=11 // pred_check_branch
          %295 = sbr.rel (%p293) target = $region28
        $region27: #{tpu_custom_call.1} parent=11 // pred_region
          _
        $region28: #{tpu_custom_call.1} parent=11 // pred_fallthru
          _
        // Predicated region
        $region29: #{tpu_custom_call.1} parent=11 // pred_check
          %p296 = pneg %p154
        $region30: #{tpu_custom_call.1} parent=11 // pred_check_branch
          %298 = sbr.rel (%p296) target = $region32
        $region31: #{tpu_custom_call.1} parent=11 // pred_region
          _
        $region32: #{tpu_custom_call.1} parent=11 // pred_fallthru
          _
        // Predicated region
        $region33: #{tpu_custom_call.1} parent=11 // pred_check
          %p299 = pneg %p175
        $region34: #{tpu_custom_call.1} parent=11 // pred_check_branch
          %301 = sbr.rel (%p299) target = $region36
        $region35: #{tpu_custom_call.1} parent=11 // pred_region
          _
        $region36: #{tpu_custom_call.1} parent=11 // pred_fallthru
          _
        // Predicated region
        $region37: #{tpu_custom_call.1} parent=11 // pred_check
          %p302 = pneg %p196
        $region38: #{tpu_custom_call.1} parent=11 // pred_check_branch
          %304 = sbr.rel (%p302) target = $region40
        $region39: #{tpu_custom_call.1} parent=11 // pred_region
          _
        $region40: #{tpu_custom_call.1} parent=11 // pred_fallthru
          _
        // Predicated region
        $region41: #{tpu_custom_call.1} parent=11 // pred_check
          %p305 = pneg %p217
        $region42: #{tpu_custom_call.1} parent=11 // pred_check_branch
          %307 = sbr.rel (%p305) target = $region44
        $region43: #{tpu_custom_call.1} parent=11 // pred_region
          _
        $region44: #{tpu_custom_call.1} parent=11 // pred_fallthru
          _
      $region12: #{tpu_custom_call.1} parent=5 // pred_fallthru
        _
      %p308 = scmp.lt.s32.totalorder %s23, 2
      // Predicated region
      $region45: #{tpu_custom_call.1} parent=5 // pred_check
        %p309 = pneg %p308
      $region46: #{tpu_custom_call.1} parent=5 // pred_check_branch
        %311 = sbr.rel (%p309) target = $region48
      $region47: #{tpu_custom_call.1} parent=5 // pred_region
        // Predicated region
        $region49: #{tpu_custom_call.1} parent=47 // pred_check
          %p312 = pneg %p43
        $region50: #{tpu_custom_call.1} parent=47 // pred_check_branch
          %314 = sbr.rel (%p312) target = $region52
        $region51: #{tpu_custom_call.1} parent=47 // pred_region
          %p315 = scmp.lt.s32.totalorder %s23, 1
          %s316 = scalar_select %p315, %s23, 1
          %s317 = smul.addr %s316, 2
          %s318 = smul.addr %s317, 4
          %s319 = scalar_lea.vmem %s0, %s318
        $region52: #{tpu_custom_call.1} parent=47 // pred_fallthru
          _
      $region48: #{tpu_custom_call.1} parent=5 // pred_fallthru
        _
      %p320 = scmp.le.s32.totalorder 1, %s23
      %p321 = scmp.lt.s32.totalorder %s23, 3
      %p322 = pnand %p320, %p321
      %p323 = pneg %p322
      // Predicated region
      $region53: #{tpu_custom_call.1} parent=5 // pred_check
        _
      $region54: #{tpu_custom_call.1} parent=5 // pred_check_branch
        %325 = sbr.rel (%p322) target = $region56
      $region55: #{tpu_custom_call.1} parent=5 // pred_region
        %s326 = ssub.s32 %s23, 1
        %p327 = scmp.lt.s32.totalorder %s28, 1
        %s328 = scalar_select %p327, %s28, 1
        %s329 = smul.addr %s328, 2
        %s330 = smul.addr %s329, 4
        %s331 = scalar_lea.vmem %s0, %s330
        %p332 = pneg %p49
        %p333 = pneg %p46
        %p334 = pneg %p70
        %p335 = pneg %p67
        %p336 = pneg %p91
        %p337 = pneg %p88
        %p338 = pneg %p112
        %p339 = pneg %p109
        %p340 = pneg %p133
        %p341 = pneg %p130
        %p342 = pneg %p154
        %p343 = pneg %p151
        %p344 = pneg %p175
        %p345 = pneg %p172
        %p346 = pneg %p196
        %p347 = pneg %p193
        %p348 = pneg %p217
        %p349 = pneg %p214
        %p350 = pneg %p243
        %p351 = pneg %p240
        %s352 = sand.u32 %s230, 1
        %s353 = scalar_lea.sflag [#allocation3], %s352
        %s354 = sand.u32 %s230, 1
        %s355 = scalar_lea.vmem [#allocation2], %s354
        %p356 = pneg %p269
        %p357 = pneg %p266
        %s358 = sand.u32 %s256, 1
        %s359 = scalar_lea.sflag [#allocation5], %s358
        %s360 = sand.u32 %s256, 1
        %s361 = smul.addr %s360, 8
        %s362 = scalar_lea.vmem [#allocation4], %s361
        %p363 = scmp.lt.s32.totalorder %s28, 1
        %s364 = scalar_select %p363, %s28, 1
        %s365 = smul.addr %s364, 2
        %s366 = smul.addr %s365, 4
        %s367 = scalar_lea.vmem %s0, %s366
        %v368 = vld [vmem:[%s367] sm:$0xff]
        %v370 = vcombine.high %v368, %v368
        %vm372 = vcmask 1043456
        %v373 = vsel %vm372, %v368, 0.0
        %v374 = vsel %vm372, %v370, 0.0
        %v375 = vadd.f32 %v373, %v374
        %376 = vadd.xlane.f32.xlu0 %v375
        %v377 = vpop.xlane.xlu0 %376
        %v378 = vrcp.pop 256.0
        %v379 = vmul.f32 %v377, %v378
        %v380 = vld [vmem:[%s1] sm:$0xf]
        %v381 = vld [vmem:[%s2] sm:$0x1]
        %v383 = vlaneseq
        %v384 = vand.u32 %v383, 127
        %v385 = vlaneseq
        %v386 = vshrl.u32 %v385, 7
        %v387 = vsub.s32 %v384, %v386
        %v388 = vrot.slane %v379, %v387
        %vm389 = vcmask 31744
        %v390 = vsel %vm389, %v388, 0
        %v393 = vsel %vm372, %v380, 0
        %395 = vmatprep.subr.mxu0 0.0
        %396 = vmatpush1.msra.mxu0 %v393
        %397 = vmatprep.subr.mxu0 0.0
        %398 = vmatpush1.msra.mxu0 0.0
        %399 = vmatprep.subr.mxu0 0.0
        %400 = vmatpush1.msra.mxu0 0.0
        %401 = vmatprep.subr.mxu0 0.0
        %402 = vmatpush1.msra.mxu0 0.0
        %403 = vmatprep.subr.mxu0 0.0
        %404 = vmatpush1.msra.mxu0 0.0
        %405 = vmatprep.subr.mxu0 0.0
        %406 = vmatpush1.msra.mxu0 0.0
        %407 = vmatprep.subr.mxu0 0.0
        %408 = vmatpush1.msra.mxu0 0.0
        %409 = vmatprep.subr.mxu0 0.0
        %410 = vmatpush1.msra.mxu0 0.0
        %411 = vmatprep.subr.mxu0 0.0
        %412 = vmatpush1.msra.mxu0 0.0
        %413 = vmatprep.subr.mxu0 0.0
        %414 = vmatpush1.msra.mxu0 0.0
        %415 = vmatprep.subr.mxu0 0.0
        %416 = vmatpush1.msra.mxu0 0.0
        %417 = vmatprep.subr.mxu0 0.0
        %418 = vmatpush1.msra.mxu0 0.0
        %419 = vmatprep.subr.mxu0 0.0
        %420 = vmatpush1.msra.mxu0 0.0
        %421 = vmatprep.subr.mxu0 0.0
        %422 = vmatpush1.msra.mxu0 0.0
        %423 = vmatprep.subr.mxu0 0.0
        %424 = vmatpush1.msra.mxu0 0.0
        %425 = vmatprep.subr.mxu0 0.0
        %426 = vmatpush1.msra.mxu0 0.0
        %427 = vmatprep.subr.mxu0 0.0
        %428 = vmatpush1.msra.mxu0 0.0
        %429 = vmatprep.subr.mxu0 0.0
        %430 = vmatpush1.msra.mxu0 0.0
        %431 = vmatprep.subr.mxu0 0.0
        %432 = vmatpush1.msra.mxu0 0.0
        %433 = vmatprep.subr.mxu0 0.0
        %434 = vmatpush1.msra.mxu0 0.0
        %435 = vmatprep.subr.mxu0 0.0
        %436 = vmatpush1.msra.mxu0 0.0
        %437 = vmatprep.subr.mxu0 0.0
        %438 = vmatpush1.msra.mxu0 0.0
        %439 = vmatprep.subr.mxu0 0.0
        %440 = vmatpush1.msra.mxu0 0.0
        %441 = vmatprep.subr.mxu0 0.0
        %442 = vmatpush1.msra.mxu0 0.0
        %443 = vmatprep.subr.mxu0 0.0
        %444 = vmatpush1.msra.mxu0 0.0
        %445 = vmatprep.subr.mxu0 0.0
        %446 = vmatpush1.msra.mxu0 0.0
        %447 = vmatprep.subr.mxu0 0.0
        %448 = vmatpush1.msra.mxu0 0.0
        %449 = vmatprep.subr.mxu0 0.0
        %450 = vmatpush1.msra.mxu0 0.0
        %451 = vmatprep.subr.mxu0 0.0
        %452 = vmatpush1.msra.mxu0 0.0
        %453 = vmatprep.subr.mxu0 0.0
        %454 = vmatpush1.msra.mxu0 0.0
        %455 = vmatprep.subr.mxu0 0.0
        %456 = vmatpush1.msra.mxu0 0.0
        %457 = vmatprep.subr.mxu0 0.0
        %458 = vmatpush1.msra.mxu0 0.0
        %459 = vmatprep.mubr.f32.mxu0 0.0
        %460 = vmatmul.mubr.f32.gmra.mrb[0].mxu0 %v390
        %v461 = vpop.f32.mrb[0].mxu0
        %v462 = vadd.f32 %v381, %v461
        %v463 = vpop.f32.mrb[0].mxu0
        %464 = vdwg.mxu0
        %v465 = vmax.f32 %v462, 0.0
        %v466 = vld [vmem:[%s3] sm:$0xff]
        %v467 = vld [vmem:[%s3 + $0x8] sm:$0xff]
        %v468 = vld [vmem:[%s3 + $0x10] sm:$0xff]
        %v469 = vld [vmem:[%s3 + $0x18] sm:$0xff]
        %v470 = vld [vmem:[%s4] sm:$0x1]
        %vm471 = vcmask 261120
        %v473 = vsel %vm471, %v465, 0
        %475 = vmatprep.subr.mxu0 0.0
        %476 = vmatpush1.msra.mxu0 %v466
        %477 = vmatprep.subr.mxu0 0.0
        %478 = vmatpush1.msra.mxu0 %v467
        %479 = vmatprep.subr.mxu0 0.0
        %480 = vmatpush1.msra.mxu0 %v468
        %481 = vmatprep.subr.mxu0 0.0
        %482 = vmatpush1.msra.mxu0 %v469
        %483 = vmatprep.subr.mxu0 0.0
        %484 = vmatpush1.msra.mxu0 0.0
        %485 = vmatprep.subr.mxu0 0.0
        %486 = vmatpush1.msra.mxu0 0.0
        %487 = vmatprep.subr.mxu0 0.0
        %488 = vmatpush1.msra.mxu0 0.0
        %489 = vmatprep.subr.mxu0 0.0
        %490 = vmatpush1.msra.mxu0 0.0
        %491 = vmatprep.subr.mxu0 0.0
        %492 = vmatpush1.msra.mxu0 0.0
        %493 = vmatprep.subr.mxu0 0.0
        %494 = vmatpush1.msra.mxu0 0.0
        %495 = vmatprep.subr.mxu0 0.0
        %496 = vmatpush1.msra.mxu0 0.0
        %497 = vmatprep.subr.mxu0 0.0
        %498 = vmatpush1.msra.mxu0 0.0
        %499 = vmatprep.subr.mxu0 0.0
        %500 = vmatpush1.msra.mxu0 0.0
        %501 = vmatprep.subr.mxu0 0.0
        %502 = vmatpush1.msra.mxu0 0.0
        %503 = vmatprep.subr.mxu0 0.0
        %504 = vmatpush1.msra.mxu0 0.0
        %505 = vmatprep.subr.mxu0 0.0
        %506 = vmatpush1.msra.mxu0 0.0
        %507 = vmatprep.subr.mxu0 0.0
        %508 = vmatpush1.msra.mxu0 0.0
        %509 = vmatprep.subr.mxu0 0.0
        %510 = vmatpush1.msra.mxu0 0.0
        %511 = vmatprep.subr.mxu0 0.0
        %512 = vmatpush1.msra.mxu0 0.0
        %513 = vmatprep.subr.mxu0 0.0
        %514 = vmatpush1.msra.mxu0 0.0
        %515 = vmatprep.subr.mxu0 0.0
        %516 = vmatpush1.msra.mxu0 0.0
        %517 = vmatprep.subr.mxu0 0.0
        %518 = vmatpush1.msra.mxu0 0.0
        %519 = vmatprep.subr.mxu0 0.0
        %520 = vmatpush1.msra.mxu0 0.0
        %521 = vmatprep.subr.mxu0 0.0
        %522 = vmatpush1.msra.mxu0 0.0
        %523 = vmatprep.subr.mxu0 0.0
        %524 = vmatpush1.msra.mxu0 0.0
        %525 = vmatprep.subr.mxu0 0.0
        %526 = vmatpush1.msra.mxu0 0.0
        %527 = vmatprep.subr.mxu0 0.0
        %528 = vmatpush1.msra.mxu0 0.0
        %529 = vmatprep.subr.mxu0 0.0
        %530 = vmatpush1.msra.mxu0 0.0
        %531 = vmatprep.subr.mxu0 0.0
        %532 = vmatpush1.msra.mxu0 0.0
        %533 = vmatprep.subr.mxu0 0.0
        %534 = vmatpush1.msra.mxu0 0.0
        %535 = vmatprep.subr.mxu0 0.0
        %536 = vmatpush1.msra.mxu0 0.0
        %537 = vmatprep.subr.mxu0 0.0
        %538 = vmatpush1.msra.mxu0 0.0
        %539 = vmatprep.mubr.f32.mxu0 0.0
        %540 = vmatmul.mubr.f32.gmra.mrb[0].mxu0 %v473
        %v541 = vpop.f32.mrb[0].mxu0
        %v542 = vadd.f32 %v470, %v541
        %v543 = vpop.f32.mrb[0].mxu0
        %544 = vdwg.mxu0
        %546 = vset.pattern.permute.xlu0 0
        %547 = vperm.xlu0 %546, %v542
        %v548 = vpop.permute.xlu0 %547
        %v550 = vlaneseq
        %v551 = vshrl.u32 %v550, 7
        %v552 = vsub.s32 0, %v551
        %v553 = vrot.slane %v368, %v552
        %v554 = vlaneseq
        %v555 = vshrl.u32 %v554, 7
        %v556 = vsub.s32 4, %v555
        %v557 = vrot.slane %v368, %v556
        %v560 = vmul.f32 %v548, %v553
        %v561 = vmul.f32 %v548, %v557
        %562 = vset.pattern.permute.xlu0 1
        %563 = vperm.xlu0 %562, %v542
        %v564 = vpop.permute.xlu0 %563
        %v566 = vlaneseq
        %v567 = vshrl.u32 %v566, 7
        %v568 = vsub.s32 1, %v567
        %v569 = vrot.slane %v368, %v568
        %v570 = vlaneseq
        %v571 = vshrl.u32 %v570, 7
        %v572 = vsub.s32 5, %v571
        %v573 = vrot.slane %v368, %v572
        %v576 = vmul.f32 %v564, %v569
        %v577 = vmul.f32 %v564, %v573
        %v578 = vadd.f32 %v560, %v576
        %v579 = vadd.f32 %v561, %v577
        %580 = vset.pattern.permute.xlu0 2
        %581 = vperm.xlu0 %580, %v542
        %v582 = vpop.permute.xlu0 %581
        %v584 = vlaneseq
        %v585 = vshrl.u32 %v584, 7
        %v586 = vsub.s32 2, %v585
        %v587 = vrot.slane %v368, %v586
        %v588 = vlaneseq
        %v589 = vshrl.u32 %v588, 7
        %v590 = vsub.s32 6, %v589
        %v591 = vrot.slane %v368, %v590
        %v594 = vmul.f32 %v582, %v587
        %v595 = vmul.f32 %v582, %v591
        %v596 = vadd.f32 %v578, %v594
        %v597 = vadd.f32 %v579, %v595
        %598 = vset.pattern.permute.xlu0 3
        %599 = vperm.xlu0 %598, %v542
        %v600 = vpop.permute.xlu0 %599
        %v602 = vlaneseq
        %v603 = vshrl.u32 %v602, 7
        %v604 = vsub.s32 3, %v603
        %v605 = vrot.slane %v368, %v604
        %v606 = vlaneseq
        %v607 = vshrl.u32 %v606, 7
        %v608 = vsub.s32 7, %v607
        %v609 = vrot.slane %v368, %v608
        %v612 = vmul.f32 %v600, %v605
        %v613 = vmul.f32 %v600, %v609
        %v614 = vadd.f32 %v596, %v612
        %v615 = vadd.f32 %v597, %v613
        %616 = vset.pattern.permute.xlu0 16
        %617 = vperm.xlu0 %616, %v542
        %v618 = vpop.permute.xlu0 %617
        %v620 = vadd.f32 %v614, %v618
        %v621 = vadd.f32 %v615, %v618
        %vm622 = vcmask 1040384
        %v623 = vsel %vm622, %v620, 0.0
        %v624 = vsel %vm622, %v621, 0.0
        %v625 = vadd.f32 %v623, %v624
        %626 = vadd.xlane.f32.xlu0 %v625
        %v627 = vpop.xlane.xlu0 %626
        %v628 = vmul.f32 %v627, %v378
        %629 = vset.pattern.permute.xlu0 4
        %630 = vperm.xlu0 %629, %v542
        %v631 = vpop.permute.xlu0 %630
        %v633 = vmul.f32 %v631, %v553
        %v634 = vmul.f32 %v631, %v557
        %635 = vset.pattern.permute.xlu0 5
        %636 = vperm.xlu0 %635, %v542
        %v637 = vpop.permute.xlu0 %636
        %v639 = vmul.f32 %v637, %v569
        %v640 = vmul.f32 %v637, %v573
        %v641 = vadd.f32 %v633, %v639
        %v642 = vadd.f32 %v634, %v640
        %643 = vset.pattern.permute.xlu0 6
        %644 = vperm.xlu0 %643, %v542
        %v645 = vpop.permute.xlu0 %644
        %v647 = vmul.f32 %v645, %v587
        %v648 = vmul.f32 %v645, %v591
        %v649 = vadd.f32 %v641, %v647
        %v650 = vadd.f32 %v642, %v648
        %651 = vset.pattern.permute.xlu0 7
        %652 = vperm.xlu0 %651, %v542
        %v653 = vpop.permute.xlu0 %652
        %v655 = vmul.f32 %v653, %v605
        %v656 = vmul.f32 %v653, %v609
        %v657 = vadd.f32 %v649, %v655
        %v658 = vadd.f32 %v650, %v656
        %659 = vset.pattern.permute.xlu0 17
        %660 = vperm.xlu0 %659, %v542
        %v661 = vpop.permute.xlu0 %660
        %v663 = vadd.f32 %v657, %v661
        %v664 = vadd.f32 %v658, %v661
        %v665 = vsel %vm622, %v663, 0.0
        %v666 = vsel %vm622, %v664, 0.0
        %v667 = vadd.f32 %v665, %v666
        %668 = vadd.xlane.f32.xlu0 %v667
        %v669 = vpop.xlane.xlu0 %668
        %v670 = vmul.f32 %v669, %v378
        %671 = vset.pattern.permute.xlu0 8
        %672 = vperm.xlu0 %671, %v542
        %v673 = vpop.permute.xlu0 %672
        %v675 = vmul.f32 %v673, %v553
        %v676 = vmul.f32 %v673, %v557
        %677 = vset.pattern.permute.xlu0 9
        %678 = vperm.xlu0 %677, %v542
        %v679 = vpop.permute.xlu0 %678
        %v681 = vmul.f32 %v679, %v569
        %v682 = vmul.f32 %v679, %v573
        %v683 = vadd.f32 %v675, %v681
        %v684 = vadd.f32 %v676, %v682
        %685 = vset.pattern.permute.xlu0 10
        %686 = vperm.xlu0 %685, %v542
        %v687 = vpop.permute.xlu0 %686
        %v689 = vmul.f32 %v687, %v587
        %v690 = vmul.f32 %v687, %v591
        %v691 = vadd.f32 %v683, %v689
        %v692 = vadd.f32 %v684, %v690
        %693 = vset.pattern.permute.xlu0 11
        %694 = vperm.xlu0 %693, %v542
        %v695 = vpop.permute.xlu0 %694
        %v697 = vmul.f32 %v695, %v605
        %v698 = vmul.f32 %v695, %v609
        %v699 = vadd.f32 %v691, %v697
        %v700 = vadd.f32 %v692, %v698
        %701 = vset.pattern.permute.xlu0 18
        %702 = vperm.xlu0 %701, %v542
        %v703 = vpop.permute.xlu0 %702
        %v705 = vadd.f32 %v699, %v703
        %v706 = vadd.f32 %v700, %v703
        %v707 = vsel %vm622, %v705, 0.0
        %v708 = vsel %vm622, %v706, 0.0
        %v709 = vadd.f32 %v707, %v708
        %710 = vadd.xlane.f32.xlu0 %v709
        %v711 = vpop.xlane.xlu0 %710
        %v712 = vmul.f32 %v711, %v378
        %713 = vset.pattern.permute.xlu0 12
        %714 = vperm.xlu0 %713, %v542
        %v715 = vpop.permute.xlu0 %714
        %v717 = vmul.f32 %v715, %v553
        %v718 = vmul.f32 %v715, %v557
        %719 = vset.pattern.permute.xlu0 13
        %720 = vperm.xlu0 %719, %v542
        %v721 = vpop.permute.xlu0 %720
        %v723 = vmul.f32 %v721, %v569
        %v724 = vmul.f32 %v721, %v573
        %v725 = vadd.f32 %v717, %v723
        %v726 = vadd.f32 %v718, %v724
        %727 = vset.pattern.permute.xlu0 14
        %728 = vperm.xlu0 %727, %v542
        %v729 = vpop.permute.xlu0 %728
        %v731 = vmul.f32 %v729, %v587
        %v732 = vmul.f32 %v729, %v591
        %v733 = vadd.f32 %v725, %v731
        %v734 = vadd.f32 %v726, %v732
        %735 = vset.pattern.permute.xlu0 15
        %736 = vperm.xlu0 %735, %v542
        %v737 = vpop.permute.xlu0 %736
        %v739 = vmul.f32 %v737, %v605
        %v740 = vmul.f32 %v737, %v609
        %v741 = vadd.f32 %v733, %v739
        %v742 = vadd.f32 %v734, %v740
        %743 = vset.pattern.permute.xlu0 19
        %744 = vperm.xlu0 %743, %v542
        %v745 = vpop.permute.xlu0 %744
        %v747 = vadd.f32 %v741, %v745
        %v748 = vadd.f32 %v742, %v745
        %v749 = vsel %vm622, %v747, 0.0
        %v750 = vsel %vm622, %v748, 0.0
        %v751 = vadd.f32 %v749, %v750
        %752 = vadd.xlane.f32.xlu0 %v751
        %v753 = vpop.xlane.xlu0 %752
        %v754 = vmul.f32 %v753, %v378
        %v757 = vrot.slane %v663, 7
        %v758 = vrot.slane %v664, 7
        %v763 = vrot.slane %v705, 6
        %v764 = vrot.slane %v706, 6
        %v769 = vrot.slane %v747, 5
        %v770 = vrot.slane %v748, 5
        %v773 = vsel %vm622, %v620, %v757
        %v774 = vsel %vm622, %v621, %v758
        %vm775 = vcmask 1041408
        %v776 = vsel %vm775, %v773, %v763
        %v777 = vsel %vm775, %v774, %v764
        %vm778 = vcmask 1042432
        %v779 = vsel %vm778, %v776, %v769
        %v780 = vsel %vm778, %v777, %v770
        %vm781 = vcmask 7168
        %v782 = vsel %vm781, %v628, %v670
        %vm783 = vcmask 15360
        %v784 = vsel %vm783, %v782, %v712
        %vm785 = vcmask 23552
        %v786 = vsel %vm785, %v784, %v754
        %v787 = vld [vmem:[%s5] sm:$0xf]
        %v788 = vld [vmem:[%s6] sm:$0x1]
        %v790 = vsel %vm389, %v786, 0
        %v793 = vsel %vm372, %v787, 0
        %795 = vmatprep.subr.mxu0 0.0
        %796 = vmatpush1.msra.mxu0 %v793
        %797 = vmatprep.subr.mxu0 0.0
        %798 = vmatpush1.msra.mxu0 0.0
        %799 = vmatprep.subr.mxu0 0.0
        %800 = vmatpush1.msra.mxu0 0.0
        %801 = vmatprep.subr.mxu0 0.0
        %802 = vmatpush1.msra.mxu0 0.0
        %803 = vmatprep.subr.mxu0 0.0
        %804 = vmatpush1.msra.mxu0 0.0
        %805 = vmatprep.subr.mxu0 0.0
        %806 = vmatpush1.msra.mxu0 0.0
        %807 = vmatprep.subr.mxu0 0.0
        %808 = vmatpush1.msra.mxu0 0.0
        %809 = vmatprep.subr.mxu0 0.0
        %810 = vmatpush1.msra.mxu0 0.0
        %811 = vmatprep.subr.mxu0 0.0
        %812 = vmatpush1.msra.mxu0 0.0
        %813 = vmatprep.subr.mxu0 0.0
        %814 = vmatpush1.msra.mxu0 0.0
        %815 = vmatprep.subr.mxu0 0.0
        %816 = vmatpush1.msra.mxu0 0.0
        %817 = vmatprep.subr.mxu0 0.0
        %818 = vmatpush1.msra.mxu0 0.0
        %819 = vmatprep.subr.mxu0 0.0
        %820 = vmatpush1.msra.mxu0 0.0
        %821 = vmatprep.subr.mxu0 0.0
        %822 = vmatpush1.msra.mxu0 0.0
        %823 = vmatprep.subr.mxu0 0.0
        %824 = vmatpush1.msra.mxu0 0.0
        %825 = vmatprep.subr.mxu0 0.0
        %826 = vmatpush1.msra.mxu0 0.0
        %827 = vmatprep.subr.mxu0 0.0
        %828 = vmatpush1.msra.mxu0 0.0
        %829 = vmatprep.subr.mxu0 0.0
        %830 = vmatpush1.msra.mxu0 0.0
        %831 = vmatprep.subr.mxu0 0.0
        %832 = vmatpush1.msra.mxu0 0.0
        %833 = vmatprep.subr.mxu0 0.0
        %834 = vmatpush1.msra.mxu0 0.0
        %835 = vmatprep.subr.mxu0 0.0
        %836 = vmatpush1.msra.mxu0 0.0
        %837 = vmatprep.subr.mxu0 0.0
        %838 = vmatpush1.msra.mxu0 0.0
        %839 = vmatprep.subr.mxu0 0.0
        %840 = vmatpush1.msra.mxu0 0.0
        %841 = vmatprep.subr.mxu0 0.0
        %842 = vmatpush1.msra.mxu0 0.0
        %843 = vmatprep.subr.mxu0 0.0
        %844 = vmatpush1.msra.mxu0 0.0
        %845 = vmatprep.subr.mxu0 0.0
        %846 = vmatpush1.msra.mxu0 0.0
        %847 = vmatprep.subr.mxu0 0.0
        %848 = vmatpush1.msra.mxu0 0.0
        %849 = vmatprep.subr.mxu0 0.0
        %850 = vmatpush1.msra.mxu0 0.0
        %851 = vmatprep.subr.mxu0 0.0
        %852 = vmatpush1.msra.mxu0 0.0
        %853 = vmatprep.subr.mxu0 0.0
        %854 = vmatpush1.msra.mxu0 0.0
        %855 = vmatprep.subr.mxu0 0.0
        %856 = vmatpush1.msra.mxu0 0.0
        %857 = vmatprep.subr.mxu0 0.0
        %858 = vmatpush1.msra.mxu0 0.0
        %859 = vmatprep.mubr.f32.mxu0 0.0
        %860 = vmatmul.mubr.f32.gmra.mrb[0].mxu0 %v790
        %v861 = vpop.f32.mrb[0].mxu0
        %v862 = vadd.f32 %v788, %v861
        %v863 = vpop.f32.mrb[0].mxu0
        %864 = vdwg.mxu0
        %v865 = vmax.f32 %v862, 0.0
        %v866 = vld [vmem:[%s7] sm:$0xff]
        %v867 = vld [vmem:[%s7 + $0x8] sm:$0xff]
        %v868 = vld [vmem:[%s7 + $0x10] sm:$0xff]
        %v869 = vld [vmem:[%s7 + $0x18] sm:$0xff]
        %v870 = vld [vmem:[%s8] sm:$0x1]
        %v872 = vsel %vm471, %v865, 0
        %874 = vmatprep.subr.mxu0 0.0
        %875 = vmatpush1.msra.mxu0 %v866
        %876 = vmatprep.subr.mxu0 0.0
        %877 = vmatpush1.msra.mxu0 %v867
        %878 = vmatprep.subr.mxu0 0.0
        %879 = vmatpush1.msra.mxu0 %v868
        %880 = vmatprep.subr.mxu0 0.0
        %881 = vmatpush1.msra.mxu0 %v869
        %882 = vmatprep.subr.mxu0 0.0
        %883 = vmatpush1.msra.mxu0 0.0
        %884 = vmatprep.subr.mxu0 0.0
        %885 = vmatpush1.msra.mxu0 0.0
        %886 = vmatprep.subr.mxu0 0.0
        %887 = vmatpush1.msra.mxu0 0.0
        %888 = vmatprep.subr.mxu0 0.0
        %889 = vmatpush1.msra.mxu0 0.0
        %890 = vmatprep.subr.mxu0 0.0
        %891 = vmatpush1.msra.mxu0 0.0
        %892 = vmatprep.subr.mxu0 0.0
        %893 = vmatpush1.msra.mxu0 0.0
        %894 = vmatprep.subr.mxu0 0.0
        %895 = vmatpush1.msra.mxu0 0.0
        %896 = vmatprep.subr.mxu0 0.0
        %897 = vmatpush1.msra.mxu0 0.0
        %898 = vmatprep.subr.mxu0 0.0
        %899 = vmatpush1.msra.mxu0 0.0
        %900 = vmatprep.subr.mxu0 0.0
        %901 = vmatpush1.msra.mxu0 0.0
        %902 = vmatprep.subr.mxu0 0.0
        %903 = vmatpush1.msra.mxu0 0.0
        %904 = vmatprep.subr.mxu0 0.0
        %905 = vmatpush1.msra.mxu0 0.0
        %906 = vmatprep.subr.mxu0 0.0
        %907 = vmatpush1.msra.mxu0 0.0
        %908 = vmatprep.subr.mxu0 0.0
        %909 = vmatpush1.msra.mxu0 0.0
        %910 = vmatprep.subr.mxu0 0.0
        %911 = vmatpush1.msra.mxu0 0.0
        %912 = vmatprep.subr.mxu0 0.0
        %913 = vmatpush1.msra.mxu0 0.0
        %914 = vmatprep.subr.mxu0 0.0
        %915 = vmatpush1.msra.mxu0 0.0
        %916 = vmatprep.subr.mxu0 0.0
        %917 = vmatpush1.msra.mxu0 0.0
        %918 = vmatprep.subr.mxu0 0.0
        %919 = vmatpush1.msra.mxu0 0.0
        %920 = vmatprep.subr.mxu0 0.0
        %921 = vmatpush1.msra.mxu0 0.0
        %922 = vmatprep.subr.mxu0 0.0
        %923 = vmatpush1.msra.mxu0 0.0
        %924 = vmatprep.subr.mxu0 0.0
        %925 = vmatpush1.msra.mxu0 0.0
        %926 = vmatprep.subr.mxu0 0.0
        %927 = vmatpush1.msra.mxu0 0.0
        %928 = vmatprep.subr.mxu0 0.0
        %929 = vmatpush1.msra.mxu0 0.0
        %930 = vmatprep.subr.mxu0 0.0
        %931 = vmatpush1.msra.mxu0 0.0
        %932 = vmatprep.subr.mxu0 0.0
        %933 = vmatpush1.msra.mxu0 0.0
        %934 = vmatprep.subr.mxu0 0.0
        %935 = vmatpush1.msra.mxu0 0.0
        %936 = vmatprep.subr.mxu0 0.0
        %937 = vmatpush1.msra.mxu0 0.0
        %938 = vmatprep.mubr.f32.mxu0 0.0
        %939 = vmatmul.mubr.f32.gmra.mrb[0].mxu0 %v872
        %v940 = vpop.f32.mrb[0].mxu0
        %v941 = vadd.f32 %v870, %v940
        %v942 = vpop.f32.mrb[0].mxu0
        %943 = vdwg.mxu0
        %vm944 = vcmask 122880
        %945 = vst.msk [vmem:[%s355] sm:$0x1] %vm944, %v941
        %v948 = vcombine.low %v779, %v780
        %950 = vst [vmem:[%s362] sm:$0xff] %v948
        %s951 = sand.u32 %s230, 1
        %s952 = scalar_lea.sflag [#allocation3], %s951
        %s953 = sand.u32 %s230, 1
        %s954 = scalar_lea.vmem [#allocation2], %s953
        %s955 = sand.u32 %s256, 1
        %s956 = scalar_lea.sflag [#allocation5], %s955
        %s957 = sand.u32 %s256, 1
        %s958 = smul.addr %s957, 8
        %s959 = scalar_lea.vmem [#allocation4], %s958
        // Predicated region
        $region57: #{tpu_custom_call.1} parent=55 // pred_check
          %p960 = pneg %p240
        $region58: #{tpu_custom_call.1} parent=55 // pred_check_branch
          %962 = sbr.rel (%p960) target = $region60
        $region59: #{tpu_custom_call.1} parent=55 // pred_region
          %s964 = ssub.s32 16, 16
          %965 = vsyncadd %s952, %s964
          %s966 = smul.addr %s28, 16
          %s967 = scalar_lea.hbm %s9, %s966
          %s969 = sshll.u32 %s954, 4
          %s970 = int_to_ptr.vmem [resolvable:$true] %s969
          %972 = dma.vmem_to_hbm [thread:$0]  %s970, 16, %s967, %s952
        $region60: #{tpu_custom_call.1} parent=55 // pred_fallthru
          _
        // Predicated region
        $region61: #{tpu_custom_call.1} parent=55 // pred_check
          %p973 = pneg %p266
        $region62: #{tpu_custom_call.1} parent=55 // pred_check_branch
          %975 = sbr.rel (%p973) target = $region64
        $region63: #{tpu_custom_call.1} parent=55 // pred_region
          %s977 = ssub.s32 128, 128
          %978 = vsyncadd %s956, %s977
          %s979 = smul.addr %s28, 2
          %s980 = smul.addr %s979, 64
          %s981 = scalar_lea.hbm %s10, %s980
          %s983 = sshll.u32 %s959, 4
          %s984 = int_to_ptr.vmem [resolvable:$true] %s983
          %986 = dma.vmem_to_hbm [thread:$0]  %s984, 128, %s981, %s956
        $region64: #{tpu_custom_call.1} parent=55 // pred_fallthru
          _
      $region56: #{tpu_custom_call.1} parent=5 // pred_fallthru
        _
      %p987 = scmp.le.s32.totalorder 2, %s23
      // Predicated region
      $region65: #{tpu_custom_call.1} parent=5 // pred_check
        %p988 = pneg %p987
      $region66: #{tpu_custom_call.1} parent=5 // pred_check_branch
        %990 = sbr.rel (%p988) target = $region68
      $region67: #{tpu_custom_call.1} parent=5 // pred_region
        %s991 = ssub.s32 %s23, 2
        // Predicated region
        $region69: #{tpu_custom_call.1} parent=67 // pred_check
          %p992 = pneg %p246
        $region70: #{tpu_custom_call.1} parent=67 // pred_check_branch
          %994 = sbr.rel (%p992) target = $region72
        $region71: #{tpu_custom_call.1} parent=67 // pred_region
          %s995 = sand.u32 %s231, 1
          %s996 = scalar_lea.sflag [#allocation3], %s995
          %s997 = sand.u32 %s231, 1
          %s998 = scalar_lea.vmem [#allocation2], %s997
          %999 = dma.done %s996, 16
        $region72: #{tpu_custom_call.1} parent=67 // pred_fallthru
          _
        // Predicated region
        $region73: #{tpu_custom_call.1} parent=67 // pred_check
          %p1000 = pneg %p272
        $region74: #{tpu_custom_call.1} parent=67 // pred_check_branch
          %1002 = sbr.rel (%p1000) target = $region76
        $region75: #{tpu_custom_call.1} parent=67 // pred_region
          %s1003 = sand.u32 %s257, 1
          %s1004 = scalar_lea.sflag [#allocation5], %s1003
          %s1005 = sand.u32 %s257, 1
          %s1006 = smul.addr %s1005, 8
          %s1007 = scalar_lea.vmem [#allocation4], %s1006
          %1008 = dma.done %s1004, 128
        $region76: #{tpu_custom_call.1} parent=67 // pred_fallthru
          _
      $region68: #{tpu_custom_call.1} parent=5 // pred_fallthru
        _
    $region6: #{tpu_custom_call.1} parent=1 // loop_footer
      %s27 = sadd.s32 1, %s23
    $region7: #{tpu_custom_call.1} parent=1 // loop_footer_branch
      %22 = sbr.rel target = $region3
    $region8: #{tpu_custom_call.1} parent=1 // loop_exit
      _
    %1009 = vsyncpa [#allocation3], 1
    %s1010 = scalar_lea.sflag [#allocation3], 1
    %1011 = vsyncpa %s1010, 1
    %1012 = vsyncpa [#allocation5], 1
    %s1013 = scalar_lea.sflag [#allocation5], 1
    %1014 = vsyncpa %s1013, 1

</llo_original>
